<compile_context>
chip_gen: v6e
topology: v6e:2x2x1
jax: 0.10.0
libtpu: 0.0.40
codegen_flags: <defaults>
</compile_context>

<pallas_src>
import jax
import jax.numpy as jnp
from jax.experimental import pallas as pl
from jax.experimental.pallas import tpu as pltpu


def _round_up(x, m):
    return ((x + m - 1) // m) * m


def _conv_matmul_tanh_kernel(p_ref, w_ref, b_ref, o_ref):
    # p_ref: (TM, K)    im2col patch tile (streams per grid step)
    # w_ref: (K, Cout)  flattened conv weight (resident)
    # b_ref: (1, Cout)  bias (resident)
    # o_ref: (TM, Cout) output tile
    acc = jnp.dot(p_ref[...], w_ref[...], preferred_element_type=jnp.float32)
    o_ref[...] = jnp.tanh(acc + b_ref[...]).astype(o_ref.dtype)


def conv2d_tanh(x, weight, bias, *, tm=512):
    """Valid-padding, stride-1 Conv2d + tanh.

    x:      (N, Cin, H, W)  float32 (PyTorch NCHW convention)
    weight: (Cout, Cin, KH, KW)
    bias:   (Cout,)
    returns (N, Cout, H-KH+1, W-KW+1) in NCHW, matching nn.Conv2d(padding='valid') + Tanh.
    """
    N, Cin, H, W = x.shape
    Cout, _, KH, KW = weight.shape
    Ho, Wo = H - KH + 1, W - KW + 1
    K = Cin * KH * KW
    M = N * Ho * Wo

    # --- im2col, NHWC-first so the flatten is a free (row-major) reshape ---
    x_nhwc = jnp.transpose(x, (0, 2, 3, 1))                     # (N, H, W, Cin) — one copy
    cols = [x_nhwc[:, kh:kh + Ho, kw:kw + Wo, :]                # static slices, (N,Ho,Wo,Cin)
            for kh in range(KH) for kw in range(KW)]
    patches = jnp.stack(cols, axis=3)                            # (N, Ho, Wo, KH*KW, Cin)
    patches = patches.reshape(M, K)                              # free reshape (trailing dims)

    # weight flattened with matching (kh, kw, ci) row ordering
    wmat = jnp.transpose(weight, (2, 3, 1, 0)).reshape(K, Cout)  # (K, Cout)
    bmat = bias.reshape(1, Cout)

    # --- tiling over M ---
    tm = min(tm, _round_up(M, 8))        # tile rows, multiple of 8 (sublane granularity)
    grid_m = pl.cdiv(M, tm)              # edge block (if any) is masked on writeback

    cost = pl.CostEstimate(
        flops=2 * M * K * Cout,
        transcendentals=M * Cout,
        bytes_accessed=4 * (M * K + K * Cout + Cout + M * Cout),
    )

    out_flat = pl.pallas_call(
        _conv_matmul_tanh_kernel,
        out_shape=jax.ShapeDtypeStruct((M, Cout), x.dtype),
        grid_spec=pltpu.PrefetchScalarGridSpec(
            num_scalar_prefetch=0,
            grid=(grid_m,),
            in_specs=[
                pl.BlockSpec((tm, K), lambda i: (i, 0)),       # streaming patch tile
                pl.BlockSpec((K, Cout), lambda i: (0, 0)),     # resident weight
                pl.BlockSpec((1, Cout), lambda i: (0, 0)),     # resident bias
            ],
            out_specs=pl.BlockSpec((tm, Cout), lambda i: (i, 0)),
        ),
        compiler_params=pltpu.CompilerParams(
            dimension_semantics=("parallel",)),                # lets v7x use both TCs
        cost_estimate=cost,
    )(patches, wmat, bmat)

    # (M, Cout) -> (N, Ho, Wo, Cout) -> NCHW to match the PyTorch module's output layout.
    # (If the consumer accepted NHWC this final transpose could be dropped.)
    return out_flat.reshape(N, Ho, Wo, Cout).transpose(0, 3, 1, 2)


if __name__ == "__main__":
    key = jax.random.PRNGKey(0)
    k_x, k_w, k_b = jax.random.split(key, 3)

    N, Cin, H, W = 2, 3, 16, 16          # module defaults: in_channels=3
    Cout, KH, KW = 128, 3, 3

    x = jax.random.normal(k_x, (N, Cin, H, W), dtype=jnp.float32)
    # deterministic parameter init (same shapes/ranges as nn.Conv2d(3, 128, (3,3)))
    fan_in = Cin * KH * KW
    bound = 1.0 / (fan_in ** 0.5)
    weight = jax.random.uniform(k_w, (Cout, Cin, KH, KW), minval=-bound, maxval=bound,
                                dtype=jnp.float32)
    bias = jax.random.uniform(k_b, (Cout,), minval=-bound, maxval=bound, dtype=jnp.float32)

    # tm=128 here so the tiny test actually exercises a multi-step grid (M=392 -> 4 steps,
    # last block partial / masked). Default tm=512 is the realistic-size setting.
    out = conv2d_tanh(x, weight, bias, tm=128)
    out = jax.block_until_ready(out)

    # reference: pure-JAX conv + tanh
    ref = jax.lax.conv_general_dilated(
        x, weight, window_strides=(1, 1), padding="VALID",
        dimension_numbers=("NCHW", "OIHW", "NCHW"))
    ref = jnp.tanh(ref + bias.reshape(1, Cout, 1, 1))

    assert out.shape == (N, Cout, H - KH + 1, W - KW + 1)
    assert jnp.allclose(out, ref, atol=1e-5, rtol=1e-5)

    print("KERNEL_OK")
</pallas_src>

<mosaic_0001>
module attributes {stable_mosaic.version = 11 : i64} {
  func.func @_conv_matmul_tanh_kernel(%arg0: i32, %arg1: memref<128x27xf32, #tpu.memory_space<vmem>>, %arg2: memref<27x128xf32, #tpu.memory_space<vmem>>, %arg3: memref<1x128xf32, #tpu.memory_space<vmem>>, %arg4: memref<128x128xf32, #tpu.memory_space<vmem>>) attributes {dimension_semantics = [#tpu.dimension_semantics<parallel>], iteration_bounds = array<i64: 4>, scalar_prefetch = 0 : i64, scratch_operands = 0 : i64, tpu.core_type = #tpu.core_type<tc>, window_params = [{transform_indices = @transform_0, window_bounds = array<i64: 128, 27>}, {pipeline_mode = #tpu.pipeline_mode<synchronous>, transform_indices = @transform_1, window_bounds = array<i64: 27, 128>}, {pipeline_mode = #tpu.pipeline_mode<synchronous>, transform_indices = @transform_2, window_bounds = array<i64: 1, 128>}, {transform_indices = @transform_3, window_bounds = array<i64: 128, 128>}]} {
    %c0 = arith.constant 0 : index
    %c0_0 = arith.constant 0 : index
    %0 = vector.load %arg1[%c0, %c0_0] : memref<128x27xf32, #tpu.memory_space<vmem>>, vector<128x27xf32>
    %c0_1 = arith.constant 0 : index
    %c0_2 = arith.constant 0 : index
    %1 = vector.load %arg2[%c0_1, %c0_2] : memref<27x128xf32, #tpu.memory_space<vmem>>, vector<27x128xf32>
    %cst = arith.constant dense<0.000000e+00> : vector<128x128xf32>
    %2 = tpu.matmul %0, %1, %cst {dimension_numbers = #tpu.dot_dimension_numbers<[1], [0], [0], [1], [0, 0, 1, 1], [], []>} : vector<128x27xf32>, vector<27x128xf32>, vector<128x128xf32> -> vector<128x128xf32>
    %c0_3 = arith.constant 0 : index
    %c0_4 = arith.constant 0 : index
    %3 = vector.load %arg3[%c0_3, %c0_4] : memref<1x128xf32, #tpu.memory_space<vmem>>, vector<1x128xf32>
    %4 = vector.broadcast %3 : vector<1x128xf32> to vector<128x128xf32>
    %5 = arith.addf %2, %4 : vector<128x128xf32>
    %6 = math.tanh %5 : vector<128x128xf32>
    %c0_5 = arith.constant 0 : index
    %c0_6 = arith.constant 0 : index
    %7 = vector.load %arg4[%c0_5, %c0_6] : memref<128x128xf32, #tpu.memory_space<vmem>>, vector<128x128xf32>
    tpu.vector_store %arg4[%c0_5, %c0_6], %6 {strides = array<i32>} : memref<128x128xf32, #tpu.memory_space<vmem>>, vector<128x128xf32>,
    return
  }
  func.func @transform_0(%arg0: i32) -> (i32, i32) {
    %c0_i32 = arith.constant 0 : i32
    %c0_i32_0 = arith.constant 0 : i32
    return %arg0, %c0_i32 : i32, i32
  }
  func.func @transform_1(%arg0: i32) -> (i32, i32) {
    %c0_i32 = arith.constant 0 : i32
    %c0_i32_0 = arith.constant 0 : i32
    %c0_i32_1 = arith.constant 0 : i32
    return %c0_i32, %c0_i32_0 : i32, i32
  }
  func.func @transform_2(%arg0: i32) -> (i32, i32) {
    %c0_i32 = arith.constant 0 : i32
    %c0_i32_0 = arith.constant 0 : i32
    %c0_i32_1 = arith.constant 0 : i32
    return %c0_i32, %c0_i32_0 : i32, i32
  }
  func.func @transform_3(%arg0: i32) -> (i32, i32) {
    %c0_i32 = arith.constant 0 : i32
    %c0_i32_0 = arith.constant 0 : i32
    return %arg0, %c0_i32 : i32, i32
  }
}

</mosaic_0001>

<llo_original>
// kernel: tpu_custom_call.1
$region0: #{tpu_custom_call.1}
  #allocation0 [shape = 'u32[]', space=smem, size = 0x4, offset = 0x4, fixed_abs, tag = 'smem constant byte address 0x4 - core index']
  #allocation1 [shape = 'u32[144,128]{1,0:T(1,128)}', space=vmem, size = 0x12000, scoped, tag = 'internal scratch']
  %s0 = inlined_call_operand.vmem [shape: f32[392,27], index: 0, kind: input, shape index: {}]
  %s1 = inlined_call_operand.vmem [shape: f32[27,128], index: 1, kind: input, shape index: {}]
  %s2 = inlined_call_operand.vmem [shape: f32[1,128], index: 2, kind: input, shape index: {}]
  %s3 = inlined_call_operand.hbm [shape: f32[392,128], index: 3, kind: output, shape index: {}]
  %s4 = sld [smem:[#allocation0]]
  $region45: #{tpu_custom_call.1} parent=0
    _
  %s6 = ssub.s32 1, %s4
  %s7 = scalar_select 0, %s6, %s4
  $region1: #{tpu_custom_call.1} parent=0
    #allocation2 [shape = 'u8[131072]{0}', space=vmem, size = 0x20000, scoped, tag = 'output window, operand 0']
    #allocation3 [shape = 's32[2]{0}', space=sflag, size = 0x8, scoped, tag = 'scoped memory for tpu_custom_call.1']
    %8 = vsyncpa [#allocation3], 0
    %s9 = scalar_lea.sflag [#allocation3], 1
    %10 = vsyncpa %s9, 0
    loop: start=0, step=1, limit=6
    $region2: #{tpu_custom_call.1} parent=1 // loop_pre_header
      _
    $region3: #{tpu_custom_call.1} parent=1 // loop_header
      %s12 = sphi 0, %s16
      %p13 = scmp.ge.s32.totalorder %s12, 6
      %s22 = sphi 0, %s24
      %s25 = sphi 0, %s22
      %s26 = sphi 0, %s25
      %s42 = sphi 0, %s26
      %s46 = sphi 0, %s46
      %s48 = sphi 0, %s46
      %s49 = sphi 0, %s48
      %s63 = sphi 0, %s49
      %s67 = sphi 0, %s67
      %s69 = sphi 0, %s67
      %s70 = sphi 0, %s69
      %s84 = sphi 0, %s70
      %s90 = sphi 0, %s92
      %s93 = sphi 0, %s90
      %s94 = sphi 0, %s93
      %s110 = sphi 0, %s94
    $region4: #{tpu_custom_call.1} parent=1 // loop_header_branch
      %15 = sbr.rel (%p13) target = $region8
    $region5: #{tpu_custom_call.1} parent=1 // loop_body
      %s17 = ssub.s32 %s12, 1
      %s18 = ssub.s32 %s12, 2
      %s19 = sadd.s32 %s12, 1
      %s20 = ssub.s32 %s12, %s19
      %p21 = scmp.eq.s32.totalorder %s20, 0
      %s23 = sadd.s32 %s22, 1
      %s24 = scalar_select %p21, %s22, %s23
      %p27 = pneg %p21
      %p28 = scmp.eq.s32.totalorder %s12, 3
      %p29 = por %p27, %p28
      %p30 = scmp.ne.s32.totalorder %s22, %s25
      %p31 = scmp.eq.s32.totalorder %s12, 0
      %p32 = por %p30, %p31
      %p33 = scmp.ne.s32.totalorder %s22, %s25
      %p34 = scmp.eq.s32.totalorder %s17, 3
      %p35 = por %p33, %p34
      %p36 = scmp.ne.s32.totalorder %s25, %s26
      %p37 = scmp.eq.s32.totalorder %s17, 0
      %p38 = por %p36, %p37
      %p39 = scmp.ne.s32.totalorder %s25, %s26
      %p40 = scmp.eq.s32.totalorder %s18, 3
      %p41 = por %p39, %p40
      %p43 = scmp.ne.s32.totalorder %s26, %s42
      %p44 = scmp.eq.s32.totalorder %s18, 0
      %p45 = por %p43, %p44
      %s47 = sadd.s32 %s46, 1
      %p50 = scmp.eq.s32.totalorder %s12, 3
      %p51 = scmp.ne.s32.totalorder %s46, %s48
      %p52 = scmp.eq.s32.totalorder %s12, 0
      %p53 = por %p51, %p52
      %p54 = scmp.ne.s32.totalorder %s46, %s48
      %p55 = scmp.eq.s32.totalorder %s17, 3
      %p56 = por %p54, %p55
      %p57 = scmp.ne.s32.totalorder %s48, %s49
      %p58 = scmp.eq.s32.totalorder %s17, 0
      %p59 = por %p57, %p58
      %p60 = scmp.ne.s32.totalorder %s48, %s49
      %p61 = scmp.eq.s32.totalorder %s18, 3
      %p62 = por %p60, %p61
      %p64 = scmp.ne.s32.totalorder %s49, %s63
      %p65 = scmp.eq.s32.totalorder %s18, 0
      %p66 = por %p64, %p65
      %s68 = sadd.s32 %s67, 1
      %p71 = scmp.eq.s32.totalorder %s12, 3
      %p72 = scmp.ne.s32.totalorder %s67, %s69
      %p73 = scmp.eq.s32.totalorder %s12, 0
      %p74 = por %p72, %p73
      %p75 = scmp.ne.s32.totalorder %s67, %s69
      %p76 = scmp.eq.s32.totalorder %s17, 3
      %p77 = por %p75, %p76
      %p78 = scmp.ne.s32.totalorder %s69, %s70
      %p79 = scmp.eq.s32.totalorder %s17, 0
      %p80 = por %p78, %p79
      %p81 = scmp.ne.s32.totalorder %s69, %s70
      %p82 = scmp.eq.s32.totalorder %s18, 3
      %p83 = por %p81, %p82
      %p85 = scmp.ne.s32.totalorder %s70, %s84
      %p86 = scmp.eq.s32.totalorder %s18, 0
      %p87 = por %p85, %p86
      %s88 = ssub.s32 %s12, %s19
      %p89 = scmp.eq.s32.totalorder %s88, 0
      %s91 = sadd.s32 %s90, 1
      %s92 = scalar_select %p89, %s90, %s91
      %p95 = pneg %p89
      %p96 = scmp.eq.s32.totalorder %s12, 3
      %p97 = por %p95, %p96
      %p98 = scmp.ne.s32.totalorder %s90, %s93
      %p99 = scmp.eq.s32.totalorder %s12, 0
      %p100 = por %p98, %p99
      %p101 = scmp.ne.s32.totalorder %s90, %s93
      %p102 = scmp.eq.s32.totalorder %s17, 3
      %p103 = por %p101, %p102
      %p104 = scmp.ne.s32.totalorder %s93, %s94
      %p105 = scmp.eq.s32.totalorder %s17, 0
      %p106 = por %p104, %p105
      %p107 = scmp.ne.s32.totalorder %s93, %s94
      %p108 = scmp.eq.s32.totalorder %s18, 3
      %p109 = por %p107, %p108
      %p111 = scmp.ne.s32.totalorder %s94, %s110
      %p112 = scmp.eq.s32.totalorder %s18, 0
      %p113 = por %p111, %p112
      %p114 = scmp.le.s32.totalorder 1, %s12
      %p115 = scmp.lt.s32.totalorder %s12, 5
      %p116 = pnand %p114, %p115
      %p117 = pneg %p116
      // Predicated region
      $region9: #{tpu_custom_call.1} parent=5 // pred_check
        _
      $region10: #{tpu_custom_call.1} parent=5 // pred_check_branch
        %119 = sbr.rel (%p116) target = $region12
      $region11: #{tpu_custom_call.1} parent=5 // pred_region
        %s120 = ssub.s32 %s12, 1
        // Predicated region
        $region13: #{tpu_custom_call.1} parent=11 // pred_check
          %p121 = pneg %p59
        $region14: #{tpu_custom_call.1} parent=11 // pred_check_branch
          %123 = sbr.rel (%p121) target = $region16
        $region15: #{tpu_custom_call.1} parent=11 // pred_region
          _
        $region16: #{tpu_custom_call.1} parent=11 // pred_fallthru
          _
        // Predicated region
        $region17: #{tpu_custom_call.1} parent=11 // pred_check
          %p124 = pneg %p80
        $region18: #{tpu_custom_call.1} parent=11 // pred_check_branch
          %126 = sbr.rel (%p124) target = $region20
        $region19: #{tpu_custom_call.1} parent=11 // pred_region
          _
        $region20: #{tpu_custom_call.1} parent=11 // pred_fallthru
          _
      $region12: #{tpu_custom_call.1} parent=5 // pred_fallthru
        _
      %p127 = scmp.lt.s32.totalorder %s12, 4
      // Predicated region
      $region21: #{tpu_custom_call.1} parent=5 // pred_check
        %p128 = pneg %p127
      $region22: #{tpu_custom_call.1} parent=5 // pred_check_branch
        %130 = sbr.rel (%p128) target = $region24
      $region23: #{tpu_custom_call.1} parent=5 // pred_region
        // Predicated region
        $region25: #{tpu_custom_call.1} parent=23 // pred_check
          %p131 = pneg %p32
        $region26: #{tpu_custom_call.1} parent=23 // pred_check_branch
          %133 = sbr.rel (%p131) target = $region28
        $region27: #{tpu_custom_call.1} parent=23 // pred_region
          %s134 = smul.u32 16, %s12
          %s135 = ssub.s32 49, %s134
          %p136 = scmp.lt.s32.totalorder %s135, 16
          %s137 = scalar_select %p136, %s135, 16
          %s138 = smul.u32 128, %s137
          %p139 = scmp.lt.s32.totalorder %s134, 48
          %s140 = scalar_select %p139, %s134, 48
          %s141 = smul.addr %s140, 8
          %s142 = scalar_lea.vmem %s0, %s141
          %s143 = smul.u32 16, %s12
          %s144 = ssub.s32 49, %s143
          %p145 = scmp.lt.s32.totalorder %s144, 16
          %s146 = scalar_select %p145, %s144, 16
          %s147 = smul.u32 128, %s146
        $region28: #{tpu_custom_call.1} parent=23 // pred_fallthru
          _
      $region24: #{tpu_custom_call.1} parent=5 // pred_fallthru
        _
      %p148 = scmp.le.s32.totalorder 1, %s12
      %p149 = scmp.lt.s32.totalorder %s12, 5
      %p150 = pnand %p148, %p149
      %p151 = pneg %p150
      // Predicated region
      $region29: #{tpu_custom_call.1} parent=5 // pred_check
        _
      $region30: #{tpu_custom_call.1} parent=5 // pred_check_branch
        %153 = sbr.rel (%p150) target = $region32
      $region31: #{tpu_custom_call.1} parent=5 // pred_region
        %s154 = ssub.s32 %s12, 1
        %s155 = smul.u32 16, %s17
        %s156 = ssub.s32 49, %s155
        %p157 = scmp.lt.s32.totalorder %s156, 16
        %s158 = scalar_select %p157, %s156, 16
        %s159 = smul.u32 128, %s158
        %p160 = scmp.lt.s32.totalorder %s155, 48
        %s161 = scalar_select %p160, %s155, 48
        %s162 = smul.addr %s161, 8
        %s163 = scalar_lea.vmem %s0, %s162
        %p164 = pneg %p38
        %p165 = pneg %p35
        %p166 = pneg %p59
        %p167 = pneg %p56
        %p168 = pneg %p80
        %p169 = pneg %p77
        %p170 = pneg %p106
        %p171 = pneg %p103
        %s172 = sand.u32 %s93, 1
        %s173 = scalar_lea.sflag [#allocation3], %s172
        %s174 = sand.u32 %s93, 1
        %s175 = smul.addr %s174, 128
        %s176 = scalar_lea.vmem [#allocation2], %s175
        %s177 = smul.u32 16, %s17
        %s178 = ssub.s32 49, %s177
        %p179 = scmp.lt.s32.totalorder %s178, 16
        %s180 = scalar_select %p179, %s178, 16
        %s181 = smul.u32 128, %s180
        %p182 = scmp.lt.s32.totalorder %s177, 48
        %s183 = scalar_select %p182, %s177, 48
        %s184 = smul.addr %s183, 8
        %s185 = scalar_lea.vmem %s0, %s184
        %s186 = smul.u32 16, %s17
        %s187 = ssub.s32 49, %s186
        %p188 = scmp.lt.s32.totalorder %s187, 16
        %s189 = scalar_select %p188, %s187, 16
        %s190 = smul.u32 128, %s189
        %s191 = smul.u32 16, %s17
        %s192 = ssub.s32 49, %s191
        %p193 = scmp.lt.s32.totalorder %s192, 16
        %s194 = scalar_select %p193, %s192, 16
        %s195 = smul.u32 128, %s194
        %v196 = vld [vmem:[%s185] sm:$0xff]
        %v197 = vld [vmem:[%s185 + $0x8] sm:$0xff]
        %v198 = vld [vmem:[%s185 + $0x10] sm:$0xff]
        %v199 = vld [vmem:[%s185 + $0x18] sm:$0xff]
        %v200 = vld [vmem:[%s185 + $0x20] sm:$0xff]
        %v201 = vld [vmem:[%s185 + $0x28] sm:$0xff]
        %v202 = vld [vmem:[%s185 + $0x30] sm:$0xff]
        %v203 = vld [vmem:[%s185 + $0x38] sm:$0xff]
        %v204 = vld [vmem:[%s185 + $0x40] sm:$0xff]
        %v205 = vld [vmem:[%s185 + $0x48] sm:$0xff]
        %v206 = vld [vmem:[%s185 + $0x50] sm:$0xff]
        %v207 = vld [vmem:[%s185 + $0x58] sm:$0xff]
        %v208 = vld [vmem:[%s185 + $0x60] sm:$0xff]
        %v209 = vld [vmem:[%s185 + $0x68] sm:$0xff]
        %v210 = vld [vmem:[%s185 + $0x70] sm:$0xff]
        %v211 = vld [vmem:[%s185 + $0x78] sm:$0xff]
        %v212 = vld [vmem:[%s1] sm:$0xff]
        %v213 = vld [vmem:[%s1 + $0x8] sm:$0xff]
        %v214 = vld [vmem:[%s1 + $0x10] sm:$0xff]
        %v215 = vld [vmem:[%s1 + $0x18] sm:$0x7]
        %v216 = vld [vmem:[%s2] sm:$0x1]
        %v218 = vlaneseq
        %v219 = vshrl.u32 %v218, 7
        %v220 = vsub.s32 0, %v219
        %v221 = vrot.slane %v216, %v220
        %vm223 = vcmask 220160
        %v225 = vsel %vm223, %v196, 0
        %v228 = vsel %vm223, %v197, 0
        %v231 = vsel %vm223, %v198, 0
        %v234 = vsel %vm223, %v199, 0
        %v237 = vsel %vm223, %v200, 0
        %v240 = vsel %vm223, %v201, 0
        %v243 = vsel %vm223, %v202, 0
        %v246 = vsel %vm223, %v203, 0
        %v249 = vsel %vm223, %v204, 0
        %v252 = vsel %vm223, %v205, 0
        %v255 = vsel %vm223, %v206, 0
        %v258 = vsel %vm223, %v207, 0
        %v261 = vsel %vm223, %v208, 0
        %v264 = vsel %vm223, %v209, 0
        %v267 = vsel %vm223, %v210, 0
        %v270 = vsel %vm223, %v211, 0
        %vm272 = vcmask 1042432
        %v274 = vsel %vm272, %v215, 0
        %276 = vmatprep.subr.mxu0 0.0
        %277 = vmatpush1.msra.mxu0 0.0
        %278 = vmatprep.subr.mxu0 0.0
        %279 = vmatpush1.msra.mxu0 0.0
        %280 = vmatprep.subr.mxu0 0.0
        %281 = vmatpush1.msra.mxu0 0.0
        %282 = vmatprep.subr.mxu0 0.0
        %283 = vmatpush1.msra.mxu0 0.0
        %284 = vmatprep.subr.mxu0 0.0
        %285 = vmatpush1.msra.mxu0 0.0
        %286 = vmatprep.subr.mxu0 0.0
        %287 = vmatpush1.msra.mxu0 0.0
        %288 = vmatprep.subr.mxu0 0.0
        %289 = vmatpush1.msra.mxu0 0.0
        %290 = vmatprep.subr.mxu0 0.0
        %291 = vmatpush1.msra.mxu0 0.0
        %292 = vmatprep.subr.mxu0 0.0
        %293 = vmatpush1.msra.mxu0 0.0
        %294 = vmatprep.subr.mxu0 0.0
        %295 = vmatpush1.msra.mxu0 0.0
        %296 = vmatprep.subr.mxu0 0.0
        %297 = vmatpush1.msra.mxu0 0.0
        %298 = vmatprep.subr.mxu0 0.0
        %299 = vmatpush1.msra.mxu0 0.0
        %300 = vmatprep.subr.mxu0 0.0
        %301 = vmatpush1.msra.mxu0 %v274
        %302 = vmatprep.subr.mxu0 0.0
        %303 = vmatpush1.msra.mxu0 %v214
        %304 = vmatprep.subr.mxu0 0.0
        %305 = vmatpush1.msra.mxu0 %v213
        %306 = vmatprep.subr.mxu0 0.0
        %307 = vmatpush1.msra.mxu0 %v212
        %308 = vmatprep.subr.mxu0 0.0
        %309 = vmatpush2.msra.mxu0 0.0
        %310 = vmatprep.subr.mxu0 0.0
        %311 = vmatpush2.msra.mxu0 0.0
        %312 = vmatprep.subr.mxu0 0.0
        %313 = vmatpush2.msra.mxu0 0.0
        %314 = vmatprep.subr.mxu0 0.0
        %315 = vmatpush2.msra.mxu0 0.0
        %316 = vmatprep.subr.mxu0 0.0
        %317 = vmatpush2.msra.mxu0 0.0
        %318 = vmatprep.subr.mxu0 0.0
        %319 = vmatpush2.msra.mxu0 0.0
        %320 = vmatprep.subr.mxu0 0.0
        %321 = vmatpush2.msra.mxu0 0.0
        %322 = vmatprep.subr.mxu0 0.0
        %323 = vmatpush2.msra.mxu0 0.0
        %324 = vmatprep.subr.mxu0 0.0
        %325 = vmatpush2.msra.mxu0 0.0
        %326 = vmatprep.subr.mxu0 0.0
        %327 = vmatpush2.msra.mxu0 0.0
        %328 = vmatprep.subr.mxu0 0.0
        %329 = vmatpush2.msra.mxu0 0.0
        %330 = vmatprep.subr.mxu0 0.0
        %331 = vmatpush2.msra.mxu0 0.0
        %332 = vmatprep.subr.mxu0 0.0
        %333 = vmatpush2.msra.mxu0 0.0
        %334 = vmatprep.subr.mxu0 0.0
        %335 = vmatpush2.msra.mxu0 0.0
        %336 = vmatprep.subr.mxu0 0.0
        %337 = vmatpush2.msra.mxu0 0.0
        %338 = vmatprep.subr.mxu0 0.0
        %339 = vmatpush2.msra.mxu0 0.0
        %340 = vmatprep.mubr.f32.mxu0 0.0
        %341 = vmatmul.mubr.f32.gmra.mxu0 %v225
        %v342 = vpop.f32.mrf.mxu0
        %v343 = vadd.f32 %v221, %v342
        %v344 = vpop.f32.mrf.mxu0
        %345 = vmatprep.mubr.f32.mxu0 0.0
        %346 = vmatmul.mubr.f32.gmra.mxu0 %v228
        %v347 = vpop.f32.mrf.mxu0
        %v348 = vadd.f32 %v221, %v347
        %v349 = vpop.f32.mrf.mxu0
        %350 = vmatprep.mubr.f32.mxu0 0.0
        %351 = vmatmul.mubr.f32.gmra.mxu0 %v231
        %v352 = vpop.f32.mrf.mxu0
        %v353 = vadd.f32 %v221, %v352
        %v354 = vpop.f32.mrf.mxu0
        %355 = vmatprep.mubr.f32.mxu0 0.0
        %356 = vmatmul.mubr.f32.gmra.mxu0 %v234
        %v357 = vpop.f32.mrf.mxu0
        %v358 = vadd.f32 %v221, %v357
        %v359 = vpop.f32.mrf.mxu0
        %360 = vmatprep.mubr.f32.mxu0 0.0
        %361 = vmatmul.mubr.f32.gmra.mxu0 %v237
        %v362 = vpop.f32.mrf.mxu0
        %v363 = vadd.f32 %v221, %v362
        %v364 = vpop.f32.mrf.mxu0
        %365 = vmatprep.mubr.f32.mxu0 0.0
        %366 = vmatmul.mubr.f32.gmra.mxu0 %v240
        %v367 = vpop.f32.mrf.mxu0
        %v368 = vadd.f32 %v221, %v367
        %v369 = vpop.f32.mrf.mxu0
        %370 = vmatprep.mubr.f32.mxu0 0.0
        %371 = vmatmul.mubr.f32.gmra.mxu0 %v243
        %v372 = vpop.f32.mrf.mxu0
        %v373 = vadd.f32 %v221, %v372
        %v374 = vpop.f32.mrf.mxu0
        %375 = vmatprep.mubr.f32.mxu0 0.0
        %376 = vmatmul.mubr.f32.gmra.mxu0 %v246
        %v377 = vpop.f32.mrf.mxu0
        %v378 = vadd.f32 %v221, %v377
        %v379 = vpop.f32.mrf.mxu0
        %380 = vmatprep.mubr.f32.mxu0 0.0
        %381 = vmatmul.mubr.f32.gmra.mxu0 %v249
        %v382 = vpop.f32.mrf.mxu0
        %v383 = vadd.f32 %v221, %v382
        %v384 = vpop.f32.mrf.mxu0
        %385 = vmatprep.mubr.f32.mxu0 0.0
        %386 = vmatmul.mubr.f32.gmra.mxu0 %v252
        %v387 = vpop.f32.mrf.mxu0
        %v388 = vadd.f32 %v221, %v387
        %v389 = vpop.f32.mrf.mxu0
        %390 = vmatprep.mubr.f32.mxu0 0.0
        %391 = vmatmul.mubr.f32.gmra.mxu0 %v255
        %v392 = vpop.f32.mrf.mxu0
        %v393 = vadd.f32 %v221, %v392
        %v394 = vpop.f32.mrf.mxu0
        %395 = vmatprep.mubr.f32.mxu0 0.0
        %396 = vmatmul.mubr.f32.gmra.mxu0 %v258
        %v397 = vpop.f32.mrf.mxu0
        %v398 = vadd.f32 %v221, %v397
        %v399 = vpop.f32.mrf.mxu0
        %400 = vmatprep.mubr.f32.mxu0 0.0
        %401 = vmatmul.mubr.f32.gmra.mxu0 %v261
        %v402 = vpop.f32.mrf.mxu0
        %v403 = vadd.f32 %v221, %v402
        %v404 = vpop.f32.mrf.mxu0
        %405 = vmatprep.mubr.f32.mxu0 0.0
        %406 = vmatmul.mubr.f32.gmra.mxu0 %v264
        %v407 = vpop.f32.mrf.mxu0
        %v408 = vadd.f32 %v221, %v407
        %v409 = vpop.f32.mrf.mxu0
        %410 = vmatprep.mubr.f32.mxu0 0.0
        %411 = vmatmul.mubr.f32.gmra.mxu0 %v267
        %v412 = vpop.f32.mrf.mxu0
        %v413 = vadd.f32 %v221, %v412
        %v414 = vpop.f32.mrf.mxu0
        %415 = vmatprep.mubr.f32.mxu0 0.0
        %416 = vmatmul.mubr.f32.gmra.mxu0 %v270
        %v417 = vpop.f32.mrf.mxu0
        %v418 = vadd.f32 %v221, %v417
        %v419 = vpop.f32.mrf.mxu0
        %420 = vdwg.mxu0
        %v421 = vtanh.pop %v343
        %v422 = vtanh.pop %v348
        %v423 = vtanh.pop %v353
        %v424 = vtanh.pop %v358
        %v425 = vtanh.pop %v363
        %v426 = vtanh.pop %v368
        %v427 = vtanh.pop %v373
        %v428 = vtanh.pop %v378
        %v429 = vtanh.pop %v383
        %v430 = vtanh.pop %v388
        %v431 = vtanh.pop %v393
        %v432 = vtanh.pop %v398
        %v433 = vtanh.pop %v403
        %v434 = vtanh.pop %v408
        %v435 = vtanh.pop %v413
        %v436 = vtanh.pop %v418
        %437 = vst [vmem:[%s176] sm:$0xff] %v421
        %438 = vst [vmem:[%s176 + $0x8] sm:$0xff] %v422
        %439 = vst [vmem:[%s176 + $0x10] sm:$0xff] %v423
        %440 = vst [vmem:[%s176 + $0x18] sm:$0xff] %v424
        %441 = vst [vmem:[%s176 + $0x20] sm:$0xff] %v425
        %442 = vst [vmem:[%s176 + $0x28] sm:$0xff] %v426
        %443 = vst [vmem:[%s176 + $0x30] sm:$0xff] %v427
        %444 = vst [vmem:[%s176 + $0x38] sm:$0xff] %v428
        %445 = vst [vmem:[%s176 + $0x40] sm:$0xff] %v429
        %446 = vst [vmem:[%s176 + $0x48] sm:$0xff] %v430
        %447 = vst [vmem:[%s176 + $0x50] sm:$0xff] %v431
        %448 = vst [vmem:[%s176 + $0x58] sm:$0xff] %v432
        %449 = vst [vmem:[%s176 + $0x60] sm:$0xff] %v433
        %450 = vst [vmem:[%s176 + $0x68] sm:$0xff] %v434
        %451 = vst [vmem:[%s176 + $0x70] sm:$0xff] %v435
        %452 = vst [vmem:[%s176 + $0x78] sm:$0xff] %v436
        %s453 = sand.u32 %s93, 1
        %s454 = scalar_lea.sflag [#allocation3], %s453
        %s455 = sand.u32 %s93, 1
        %s456 = smul.addr %s455, 128
        %s457 = scalar_lea.vmem [#allocation2], %s456
        // Predicated region
        $region33: #{tpu_custom_call.1} parent=31 // pred_check
          %p458 = pneg %p103
        $region34: #{tpu_custom_call.1} parent=31 // pred_check_branch
          %460 = sbr.rel (%p458) target = $region36
        $region35: #{tpu_custom_call.1} parent=31 // pred_region
          %s461 = smul.u32 16, %s17
          %s462 = ssub.s32 49, %s461
          %p463 = scmp.lt.s32.totalorder %s462, 16
          %s464 = scalar_select %p463, %s462, 16
          %s465 = smul.u32 128, %s464
          %s467 = ssub.s32 2048, %s465
          %468 = vsyncadd %s454, %s467
          %p469 = scmp.ne.s32.totalorder 0, %s465
          %s470 = smul.addr %s461, 128
          %s471 = scalar_lea.hbm %s3, %s470
          %s472 = smul.u32 8, %s464
          %s473 = sshll.u32 %s457, 4
          %s474 = int_to_ptr.vmem [resolvable:$true] %s473
          %s475 = sshll.u32 %s472, 4
          %479 = dma.vmem_to_hbm [thread:$0]  (%p469), %s474, %s475, %s471, %s454, 128, 128, 8
        $region36: #{tpu_custom_call.1} parent=31 // pred_fallthru
          _
      $region32: #{tpu_custom_call.1} parent=5 // pred_fallthru
        _
      %p480 = scmp.le.s32.totalorder 2, %s12
      // Predicated region
      $region37: #{tpu_custom_call.1} parent=5 // pred_check
        %p481 = pneg %p480
      $region38: #{tpu_custom_call.1} parent=5 // pred_check_branch
        %483 = sbr.rel (%p481) target = $region40
      $region39: #{tpu_custom_call.1} parent=5 // pred_region
        %s484 = ssub.s32 %s12, 2
        // Predicated region
        $region41: #{tpu_custom_call.1} parent=39 // pred_check
          %p485 = pneg %p109
        $region42: #{tpu_custom_call.1} parent=39 // pred_check_branch
          %487 = sbr.rel (%p485) target = $region44
        $region43: #{tpu_custom_call.1} parent=39 // pred_region
          %s488 = sand.u32 %s94, 1
          %s489 = scalar_lea.sflag [#allocation3], %s488
          %s490 = sand.u32 %s94, 1
          %s491 = smul.addr %s490, 128
          %s492 = scalar_lea.vmem [#allocation2], %s491
          %493 = dma.done %s489, 2048
        $region44: #{tpu_custom_call.1} parent=39 // pred_fallthru
          _
      $region40: #{tpu_custom_call.1} parent=5 // pred_fallthru
        _
    $region6: #{tpu_custom_call.1} parent=1 // loop_footer
      %s16 = sadd.s32 1, %s12
    $region7: #{tpu_custom_call.1} parent=1 // loop_footer_branch
      %11 = sbr.rel target = $region3
    $region8: #{tpu_custom_call.1} parent=1 // loop_exit
      _
    %494 = vsyncpa [#allocation3], 1
    %s495 = scalar_lea.sflag [#allocation3], 1
    %496 = vsyncpa %s495, 1

</llo_original>
